<compile_context>
chip_gen: v7x
topology: tpu7x:2x2x1
jax: 0.10.0
libtpu: 0.0.40
codegen_flags: <defaults>
</compile_context>

<pallas_src>
import jax
import jax.numpy as jnp
from jax.experimental import pallas as pl
from jax.experimental.pallas import tpu as pltpu


_LANES = 128               # TPU vreg lane width (hidden dim padding)
_SUBLANES = 8              # TPU vreg sublane count (f32) -> row / narrow-output padding
_TILE_ROWS = 2048          # batch tile for the grid path
_GRIDLESS_MAX_ROWS = 2 * _TILE_ROWS   # <= this: single gridless call; above: >=2 grid steps


def _round_up(n, m):
    return ((n + m - 1) // m) * m


def _mlp_kernel(x_ref, w1_ref, b1_ref, w2_ref, o_ref):
    # net1: MXU matmul with f32 accumulation; bias add + relu on the VPU over a fully
    # lane-dense (rows, 128) tile.  h stays whole between the two dots (no slicing).
    h = jnp.dot(x_ref[...], w1_ref[...], preferred_element_type=jnp.float32)
    h = jnp.maximum(h + b1_ref[...], 0.0)
    # net2: (rows,128) x (128,8); b2 is already folded into w2 via the "ones" hidden unit.
    out = jnp.dot(h, w2_ref[...], preferred_element_type=jnp.float32)
    o_ref[...] = out.astype(o_ref.dtype)   # only 8 lanes wide -> ~16x less HBM writeback


def prepare_toy_model_params(w1, b1, w2, b2):
    """One-time parameter prep: pad to hardware-friendly shapes and fold b2 into w2.

    Inputs use the (in, out) layout: w1 (10, 32), b1 (32,), w2 (32, 5), b2 (5,).
    Returns (w1_pad (10,128), b1_aug (1,128), w2_aug (128,8), d_out).
    """
    d_in, d_hidden = w1.shape
    d_out = w2.shape[1]
    hp = _round_up(d_hidden + 1, _LANES)       # +1 "ones" unit used to carry b2
    npad = _round_up(d_out, _SUBLANES)         # narrow output: 8, not 128
    ones_unit = d_hidden                       # index 32

    w1_pad = jnp.zeros((d_in, hp), jnp.float32).at[:, :d_hidden].set(w1)
    b1_aug = (jnp.zeros((1, hp), jnp.float32)
              .at[0, :d_hidden].set(b1)
              .at[0, ones_unit].set(1.0))      # relu(0 * x + 1) == 1
    w2_aug = (jnp.zeros((hp, npad), jnp.float32)
              .at[:d_hidden, :d_out].set(w2)
              .at[ones_unit, :d_out].set(b2))  # 1 * b2 row  ==  + b2
    return w1_pad, b1_aug, w2_aug, d_out


def _gridless_call(x, w1_pad, b1_aug, w2_aug):
    """Single-invocation path: no grid, all operands whole-array in VMEM."""
    B, _ = x.shape
    npad = w2_aug.shape[1]
    b_pad = _round_up(max(B, _SUBLANES), _SUBLANES)
    x_p = jnp.pad(x, ((0, b_pad - B), (0, 0))) if b_pad != B else x
    vmem = pl.BlockSpec(memory_space=pltpu.MemorySpace.VMEM)
    return pl.pallas_call(
        _mlp_kernel,
        out_shape=jax.ShapeDtypeStruct((b_pad, npad), x.dtype),
        in_specs=[vmem, vmem, vmem, vmem],
        out_specs=vmem,
        compiler_params=pltpu.CompilerParams(vmem_limit_bytes=32 << 20),
    )(x_p, w1_pad, b1_aug, w2_aug)


def _grid_call(x, tb, w1_pad, b1_aug, w2_aug):
    """Batch-tiled path.  x.shape[0] must be a multiple of tb (>= 2 grid steps)."""
    B, d_in = x.shape
    hp = w1_pad.shape[1]
    npad = w2_aug.shape[1]
    return pl.pallas_call(
        _mlp_kernel,
        out_shape=jax.ShapeDtypeStruct((B, npad), x.dtype),
        grid=(B // tb,),
        in_specs=[
            pl.BlockSpec((tb, d_in), lambda i: (i, 0)),
            pl.BlockSpec((d_in, hp), lambda i: (0, 0)),   # VMEM-resident across steps
            pl.BlockSpec((1, hp), lambda i: (0, 0)),
            pl.BlockSpec((hp, npad), lambda i: (0, 0)),
        ],
        out_specs=pl.BlockSpec((tb, npad), lambda i: (i, 0)),
        compiler_params=pltpu.CompilerParams(
            dimension_semantics=("parallel",),            # v7x: 2 TCs split the batch
        ),
    )(x, w1_pad, b1_aug, w2_aug)


def toy_model_forward(x, w1_pad, b1_aug, w2_aug, d_out):
    """Fused Linear->ReLU->Linear forward.  x: (B, 10) f32.  Returns (B, d_out)."""
    B, _ = x.shape

    if B <= _GRIDLESS_MAX_ROWS:
        out = _gridless_call(x, w1_pad, b1_aug, w2_aug)
        return out[:B, :d_out]

    # Large batch: keep >= 2 grid steps (B > 2*_TILE_ROWS and tb <= _TILE_ROWS) and avoid
    # padding x -- the ragged tail goes through one extra gridless call instead.
    tb = min(_TILE_ROWS, _round_up(pl.cdiv(B, 2), _SUBLANES))
    b_main = (B // tb) * tb
    out_main = _grid_call(x[:b_main], tb, w1_pad, b1_aug, w2_aug)
    if b_main == B:
        return out_main[:, :d_out]
    tail = B - b_main
    out_tail = _gridless_call(x[b_main:], w1_pad, b1_aug, w2_aug)[:tail]
    return jnp.concatenate([out_main, out_tail], axis=0)[:, :d_out]


def _init_linear(key, in_features, out_features):
    """Deterministic init mimicking torch.nn.Linear default (uniform +/- 1/sqrt(in))."""
    kw, kb = jax.random.split(key)
    bound = 1.0 / (in_features ** 0.5)
    # Stored as (in, out) for the x @ W convention (transpose of PyTorch's layout).
    w = jax.random.uniform(kw, (in_features, out_features),
                           minval=-bound, maxval=bound, dtype=jnp.float32)
    b = jax.random.uniform(kb, (out_features,),
                           minval=-bound, maxval=bound, dtype=jnp.float32)
    return w, b


if __name__ == "__main__":
    key = jax.random.PRNGKey(0)
    k_xs, k_xb, k_l1, k_l2 = jax.random.split(key, 4)

    w1, b1 = _init_linear(k_l1, 10, 32)   # net1
    w2, b2 = _init_linear(k_l2, 32, 5)    # net2
    params = prepare_toy_model_params(w1, b1, w2, b2)

    def ref_fwd(x):
        return jnp.maximum(x @ w1 + b1, 0.0) @ w2 + b2

    # Small batch -> gridless path.
    x_small = jax.random.normal(k_xs, (8, 10), dtype=jnp.float32)
    out_small = jax.block_until_ready(toy_model_forward(x_small, *params))
    assert out_small.shape == (8, 5)
    assert jnp.allclose(out_small, ref_fwd(x_small), atol=1e-4, rtol=1e-4)

    # Larger batch -> batch-tiled path (2 parallel grid steps) + gridless ragged tail.
    x_big = jax.random.normal(k_xb, (5000, 10), dtype=jnp.float32)
    out_big = jax.block_until_ready(toy_model_forward(x_big, *params))
    assert out_big.shape == (5000, 5)
    assert jnp.allclose(out_big, ref_fwd(x_big), atol=1e-4, rtol=1e-4)

    print("KERNEL_OK")
</pallas_src>

<mosaic_0001>
module attributes {stable_mosaic.version = 11 : i64} {
  func.func @_mlp_kernel(%arg0: memref<8x10xf32, #tpu.memory_space<vmem>>, %arg1: memref<10x128xf32, #tpu.memory_space<vmem>>, %arg2: memref<1x128xf32, #tpu.memory_space<vmem>>, %arg3: memref<128x8xf32, #tpu.memory_space<vmem>>, %arg4: memref<8x8xf32, #tpu.memory_space<vmem>>) attributes {dimension_semantics = [], scalar_prefetch = 0 : i64, scratch_operands = 0 : i64, tpu.core_type = #tpu.core_type<tc>} {
    %c0 = arith.constant 0 : index
    %c0_0 = arith.constant 0 : index
    %0 = vector.load %arg0[%c0, %c0_0] : memref<8x10xf32, #tpu.memory_space<vmem>>, vector<8x10xf32>
    %c0_1 = arith.constant 0 : index
    %c0_2 = arith.constant 0 : index
    %1 = vector.load %arg1[%c0_1, %c0_2] : memref<10x128xf32, #tpu.memory_space<vmem>>, vector<10x128xf32>
    %cst = arith.constant dense<0.000000e+00> : vector<8x128xf32>
    %2 = tpu.matmul %0, %1, %cst {dimension_numbers = #tpu.dot_dimension_numbers<[1], [0], [0], [1], [0, 0, 1, 1], [], []>} : vector<8x10xf32>, vector<10x128xf32>, vector<8x128xf32> -> vector<8x128xf32>
    %c0_3 = arith.constant 0 : index
    %c0_4 = arith.constant 0 : index
    %3 = vector.load %arg2[%c0_3, %c0_4] : memref<1x128xf32, #tpu.memory_space<vmem>>, vector<1x128xf32>
    %4 = vector.broadcast %3 : vector<1x128xf32> to vector<8x128xf32>
    %5 = arith.addf %2, %4 : vector<8x128xf32>
    %cst_5 = arith.constant 0.000000e+00 : f32
    %6 = vector.broadcast %cst_5 : f32 to vector<8x128xf32>
    %7 = arith.maximumf %5, %6 : vector<8x128xf32>
    %c0_6 = arith.constant 0 : index
    %c0_7 = arith.constant 0 : index
    %8 = vector.load %arg3[%c0_6, %c0_7] : memref<128x8xf32, #tpu.memory_space<vmem>>, vector<128x8xf32>
    %cst_8 = arith.constant dense<0.000000e+00> : vector<8x8xf32>
    %9 = tpu.matmul %7, %8, %cst_8 {dimension_numbers = #tpu.dot_dimension_numbers<[1], [0], [0], [1], [0, 0, 1, 1], [], []>} : vector<8x128xf32>, vector<128x8xf32>, vector<8x8xf32> -> vector<8x8xf32>
    %c0_9 = arith.constant 0 : index
    %c0_10 = arith.constant 0 : index
    %10 = vector.load %arg4[%c0_9, %c0_10] : memref<8x8xf32, #tpu.memory_space<vmem>>, vector<8x8xf32>
    tpu.vector_store %arg4[%c0_9, %c0_10], %9 {strides = array<i32>} : memref<8x8xf32, #tpu.memory_space<vmem>>, vector<8x8xf32>,
    return
  }
}

</mosaic_0001>

<llo_original>
// kernel: tpu_custom_call.1
$region0: #{tpu_custom_call.1}
  #allocation0 [shape = 'u32[]', space=smem, size = 0x4, offset = 0x4, fixed_abs, tag = 'smem constant byte address 0x4 - core index']
  #allocation1 [shape = 'u32[144,128]{1,0:T(1,128)}', space=vmem, size = 0x12000, scoped, tag = 'internal scratch']
  %s0 = inlined_call_operand.vmem [shape: f32[8,10], index: 0, kind: input, shape index: {}]
  %s1 = inlined_call_operand.vmem [shape: f32[10,128], index: 1, kind: input, shape index: {}]
  %s2 = inlined_call_operand.vmem [shape: f32[1,128], index: 2, kind: input, shape index: {}]
  %s3 = inlined_call_operand.vmem [shape: f32[128,8], index: 3, kind: input, shape index: {}]
  %s4 = inlined_call_operand.hbm [shape: f32[8,8], index: 4, kind: output, shape index: {}]
  %s5 = sld [smem:[#allocation0]]
  $region26: #{tpu_custom_call.1} parent=0
    _
  %s7 = ssub.s32 1, %s5
  %s8 = scalar_select 0, %s7, %s5
  $region1: #{tpu_custom_call.1} parent=0
    #allocation2 [shape = 'u8[4096]{0}', space=vmem, size = 0x1000, scoped, tag = 'output window, operand 0, single buffered']
    #allocation3 [shape = 's32[1]{0}', space=sflag, size = 0x4, scoped, tag = 'scoped memory for tpu_custom_call.1']
    %9 = vsyncpa [#allocation3], 0
    // Predicated region
    $region2: #{tpu_custom_call.1} parent=1 // pred_check
      _
    $region3: #{tpu_custom_call.1} parent=1 // pred_check_branch
      %11 = sbr.rel (0) target = $region5
    $region4: #{tpu_custom_call.1} parent=1 // pred_region
      _
    $region5: #{tpu_custom_call.1} parent=1 // pred_fallthru
      _
    // Predicated region
    $region6: #{tpu_custom_call.1} parent=1 // pred_check
      _
    $region7: #{tpu_custom_call.1} parent=1 // pred_check_branch
      %13 = sbr.rel (0) target = $region9
    $region8: #{tpu_custom_call.1} parent=1 // pred_region
      _
    $region9: #{tpu_custom_call.1} parent=1 // pred_fallthru
      _
    // Predicated region
    $region10: #{tpu_custom_call.1} parent=1 // pred_check
      _
    $region11: #{tpu_custom_call.1} parent=1 // pred_check_branch
      %15 = sbr.rel (0) target = $region13
    $region12: #{tpu_custom_call.1} parent=1 // pred_region
      _
    $region13: #{tpu_custom_call.1} parent=1 // pred_fallthru
      _
    // Predicated region
    $region14: #{tpu_custom_call.1} parent=1 // pred_check
      _
    $region15: #{tpu_custom_call.1} parent=1 // pred_check_branch
      %17 = sbr.rel (0) target = $region17
    $region16: #{tpu_custom_call.1} parent=1 // pred_region
      _
    $region17: #{tpu_custom_call.1} parent=1 // pred_fallthru
      _
    %v18 = vld [vmem:[%s0] sm:$0xff]
    %v19 = vld [vmem:[%s1] sm:$0xff]
    %v20 = vld [vmem:[%s1 + $0x8] sm:$0x3]
    %v21 = vld [vmem:[%s2] sm:$0x1]
    %v23 = vlaneseq
    %v24 = vshrl.u32 %v23, 7
    %v25 = vsub.s32 0, %v24
    %v26 = vrot.slane %v21, %v25
    %vm28 = vcmask 80896
    %v30 = vsel %vm28, %v18, 0
    %vm32 = vcmask 1041408
    %v34 = vsel %vm32, %v20, 0
    %36 = vmatprep.subr.mxu0 0.0
    %37 = vmatpush1.msra.mxu0 %v19
    %38 = vmatprep.subr.mxu0 0.0
    %39 = vmatpush1.msra.mxu0 %v34
    %40 = vmatprep.subr.mxu0 0.0
    %41 = vmatpush1.msra.mxu0 0.0
    %42 = vmatprep.subr.mxu0 0.0
    %43 = vmatpush1.msra.mxu0 0.0
    %44 = vmatprep.subr.mxu0 0.0
    %45 = vmatpush1.msra.mxu0 0.0
    %46 = vmatprep.subr.mxu0 0.0
    %47 = vmatpush1.msra.mxu0 0.0
    %48 = vmatprep.subr.mxu0 0.0
    %49 = vmatpush1.msra.mxu0 0.0
    %50 = vmatprep.subr.mxu0 0.0
    %51 = vmatpush1.msra.mxu0 0.0
    %52 = vmatprep.subr.mxu0 0.0
    %53 = vmatpush1.msra.mxu0 0.0
    %54 = vmatprep.subr.mxu0 0.0
    %55 = vmatpush1.msra.mxu0 0.0
    %56 = vmatprep.subr.mxu0 0.0
    %57 = vmatpush1.msra.mxu0 0.0
    %58 = vmatprep.subr.mxu0 0.0
    %59 = vmatpush1.msra.mxu0 0.0
    %60 = vmatprep.subr.mxu0 0.0
    %61 = vmatpush1.msra.mxu0 0.0
    %62 = vmatprep.subr.mxu0 0.0
    %63 = vmatpush1.msra.mxu0 0.0
    %64 = vmatprep.subr.mxu0 0.0
    %65 = vmatpush1.msra.mxu0 0.0
    %66 = vmatprep.subr.mxu0 0.0
    %67 = vmatpush1.msra.mxu0 0.0
    %68 = vmatprep.subr.mxu0 0.0
    %69 = vmatpush1.msra.mxu0 0.0
    %70 = vmatprep.subr.mxu0 0.0
    %71 = vmatpush1.msra.mxu0 0.0
    %72 = vmatprep.subr.mxu0 0.0
    %73 = vmatpush1.msra.mxu0 0.0
    %74 = vmatprep.subr.mxu0 0.0
    %75 = vmatpush1.msra.mxu0 0.0
    %76 = vmatprep.subr.mxu0 0.0
    %77 = vmatpush1.msra.mxu0 0.0
    %78 = vmatprep.subr.mxu0 0.0
    %79 = vmatpush1.msra.mxu0 0.0
    %80 = vmatprep.subr.mxu0 0.0
    %81 = vmatpush1.msra.mxu0 0.0
    %82 = vmatprep.subr.mxu0 0.0
    %83 = vmatpush1.msra.mxu0 0.0
    %84 = vmatprep.subr.mxu0 0.0
    %85 = vmatpush1.msra.mxu0 0.0
    %86 = vmatprep.subr.mxu0 0.0
    %87 = vmatpush1.msra.mxu0 0.0
    %88 = vmatprep.subr.mxu0 0.0
    %89 = vmatpush1.msra.mxu0 0.0
    %90 = vmatprep.subr.mxu0 0.0
    %91 = vmatpush1.msra.mxu0 0.0
    %92 = vmatprep.subr.mxu0 0.0
    %93 = vmatpush1.msra.mxu0 0.0
    %94 = vmatprep.subr.mxu0 0.0
    %95 = vmatpush1.msra.mxu0 0.0
    %96 = vmatprep.subr.mxu0 0.0
    %97 = vmatpush1.msra.mxu0 0.0
    %98 = vmatprep.subr.mxu0 0.0
    %99 = vmatpush1.msra.mxu0 0.0
    %100 = vmatprep.mubr.f32.mxu0 0.0
    %101 = vmatmul.mubr.f32.gmra.mrb[0].mxu0 %v30
    %v102 = vpop.f32.mrb[0].mxu0
    %v103 = vadd.f32 %v26, %v102
    %v104 = vpop.f32.mrb[0].mxu0
    %105 = vdwg.mxu0
    %v106 = vmax.f32 %v103, 0.0
    %v107 = vld [vmem:[%s3] sm:$0xff]
    %v108 = vld [vmem:[%s3 + $0x8] sm:$0xff]
    %v109 = vld [vmem:[%s3 + $0x10] sm:$0xff]
    %v110 = vld [vmem:[%s3 + $0x18] sm:$0xff]
    %v111 = vld [vmem:[%s3 + $0x20] sm:$0xff]
    %v112 = vld [vmem:[%s3 + $0x28] sm:$0xff]
    %v113 = vld [vmem:[%s3 + $0x30] sm:$0xff]
    %v114 = vld [vmem:[%s3 + $0x38] sm:$0xff]
    %v115 = vld [vmem:[%s3 + $0x40] sm:$0xff]
    %v116 = vld [vmem:[%s3 + $0x48] sm:$0xff]
    %v117 = vld [vmem:[%s3 + $0x50] sm:$0xff]
    %v118 = vld [vmem:[%s3 + $0x58] sm:$0xff]
    %v119 = vld [vmem:[%s3 + $0x60] sm:$0xff]
    %v120 = vld [vmem:[%s3 + $0x68] sm:$0xff]
    %v121 = vld [vmem:[%s3 + $0x70] sm:$0xff]
    %v122 = vld [vmem:[%s3 + $0x78] sm:$0xff]
    %123 = vmatprep.subr.mxu0 0.0
    %124 = vmatpush1.msra.mxu0 %v107
    %125 = vmatprep.subr.mxu0 0.0
    %126 = vmatpush1.msra.mxu0 %v108
    %127 = vmatprep.subr.mxu0 0.0
    %128 = vmatpush1.msra.mxu0 %v109
    %129 = vmatprep.subr.mxu0 0.0
    %130 = vmatpush1.msra.mxu0 %v110
    %131 = vmatprep.subr.mxu0 0.0
    %132 = vmatpush1.msra.mxu0 %v111
    %133 = vmatprep.subr.mxu0 0.0
    %134 = vmatpush1.msra.mxu0 %v112
    %135 = vmatprep.subr.mxu0 0.0
    %136 = vmatpush1.msra.mxu0 %v113
    %137 = vmatprep.subr.mxu0 0.0
    %138 = vmatpush1.msra.mxu0 %v114
    %139 = vmatprep.subr.mxu0 0.0
    %140 = vmatpush1.msra.mxu0 %v115
    %141 = vmatprep.subr.mxu0 0.0
    %142 = vmatpush1.msra.mxu0 %v116
    %143 = vmatprep.subr.mxu0 0.0
    %144 = vmatpush1.msra.mxu0 %v117
    %145 = vmatprep.subr.mxu0 0.0
    %146 = vmatpush1.msra.mxu0 %v118
    %147 = vmatprep.subr.mxu0 0.0
    %148 = vmatpush1.msra.mxu0 %v119
    %149 = vmatprep.subr.mxu0 0.0
    %150 = vmatpush1.msra.mxu0 %v120
    %151 = vmatprep.subr.mxu0 0.0
    %152 = vmatpush1.msra.mxu0 %v121
    %153 = vmatprep.subr.mxu0 0.0
    %154 = vmatpush1.msra.mxu0 %v122
    %155 = vmatprep.subr.mxu0 0.0
    %156 = vmatpush1.msra.mxu0 0.0
    %157 = vmatprep.subr.mxu0 0.0
    %158 = vmatpush1.msra.mxu0 0.0
    %159 = vmatprep.subr.mxu0 0.0
    %160 = vmatpush1.msra.mxu0 0.0
    %161 = vmatprep.subr.mxu0 0.0
    %162 = vmatpush1.msra.mxu0 0.0
    %163 = vmatprep.subr.mxu0 0.0
    %164 = vmatpush1.msra.mxu0 0.0
    %165 = vmatprep.subr.mxu0 0.0
    %166 = vmatpush1.msra.mxu0 0.0
    %167 = vmatprep.subr.mxu0 0.0
    %168 = vmatpush1.msra.mxu0 0.0
    %169 = vmatprep.subr.mxu0 0.0
    %170 = vmatpush1.msra.mxu0 0.0
    %171 = vmatprep.subr.mxu0 0.0
    %172 = vmatpush1.msra.mxu0 0.0
    %173 = vmatprep.subr.mxu0 0.0
    %174 = vmatpush1.msra.mxu0 0.0
    %175 = vmatprep.subr.mxu0 0.0
    %176 = vmatpush1.msra.mxu0 0.0
    %177 = vmatprep.subr.mxu0 0.0
    %178 = vmatpush1.msra.mxu0 0.0
    %179 = vmatprep.subr.mxu0 0.0
    %180 = vmatpush1.msra.mxu0 0.0
    %181 = vmatprep.subr.mxu0 0.0
    %182 = vmatpush1.msra.mxu0 0.0
    %183 = vmatprep.subr.mxu0 0.0
    %184 = vmatpush1.msra.mxu0 0.0
    %185 = vmatprep.subr.mxu0 0.0
    %186 = vmatpush1.msra.mxu0 0.0
    %187 = vmatprep.mubr.f32.mxu0 0.0
    %188 = vmatmul.mubr.f32.gmra.mrb[0].mxu0 %v106
    %v189 = vpop.f32.mrb[0].mxu0
    %v190 = vadd.f32 0.0, %v189
    %v191 = vpop.f32.mrb[0].mxu0
    %192 = vdwg.mxu0
    %vm193 = vcmask 64512
    %194 = vst.msk [vmem:[#allocation2] sm:$0xff] %vm193, %v190
    // Predicated region
    $region18: #{tpu_custom_call.1} parent=1 // pred_check
      _
    $region19: #{tpu_custom_call.1} parent=1 // pred_check_branch
      %196 = sbr.rel (0) target = $region21
    $region20: #{tpu_custom_call.1} parent=1 // pred_region
      %s198 = ssub.s32 128, 128
      %199 = vsyncadd [#allocation3], %s198
      %s201 = sshll.u32 [#allocation2], 4
      %s202 = int_to_ptr.vmem [resolvable:$true] %s201
      %204 = dma.vmem_to_hbm [thread:$0]  %s202, 128, %s4, [#allocation3]
    $region21: #{tpu_custom_call.1} parent=1 // pred_fallthru
      _
    // Predicated region
    $region22: #{tpu_custom_call.1} parent=1 // pred_check
      _
    $region23: #{tpu_custom_call.1} parent=1 // pred_check_branch
      %206 = sbr.rel (0) target = $region25
    $region24: #{tpu_custom_call.1} parent=1 // pred_region
      %207 = dma.done [#allocation3], 128
    $region25: #{tpu_custom_call.1} parent=1 // pred_fallthru
      _
    %208 = vsyncpa [#allocation3], 1

</llo_original>
